<compile_context>
chip_gen: v6e
topology: v6e:2x2x1
jax: 0.10.0
libtpu: 0.0.40
codegen_flags: <defaults>
</compile_context>

<pallas_src>
import jax
import jax.numpy as jnp
from jax.experimental import pallas as pl
from jax.experimental.pallas import tpu as pltpu


# ---------------------------------------------------------------------------
# Kernels
# ---------------------------------------------------------------------------

def _wlp_kernel_f32(w_ref, x_ref, o_ref):
    """float32 output: accumulate directly into the resident output block."""
    l = pl.program_id(1)

    @pl.when(l == 0)
    def _init():
        o_ref[...] = w_ref[l] * x_ref[0]

    @pl.when(l != 0)
    def _accum():
        o_ref[...] += w_ref[l] * x_ref[0]


def _wlp_kernel_acc(w_ref, x_ref, o_ref, acc_ref):
    """Narrow output (bf16/f16): accumulate in f32 scratch, cast at finalize."""
    l = pl.program_id(1)

    @pl.when(l == 0)
    def _init():
        acc_ref[...] = jnp.zeros_like(acc_ref)

    acc_ref[...] += w_ref[l] * x_ref[0].astype(jnp.float32)

    @pl.when(l == pl.num_programs(1) - 1)
    def _finalize():
        o_ref[...] = acc_ref[...].astype(o_ref.dtype)


# ---------------------------------------------------------------------------
# Tiling heuristics
# ---------------------------------------------------------------------------

def _vmem_budgets():
    """Return (live_block_budget_bytes, vmem_limit_bytes) for this chip."""
    vmem_cap = 128 << 20
    try:
        vmem_cap = int(pltpu.get_tpu_info().vmem_capacity_bytes)
    except Exception:
        pass
    if vmem_cap <= (64 << 20):
        # v7x: 64 MiB physical VMEM per TensorCore -> ~8-10 MiB input blocks.
        return 36 << 20, 48 << 20
    # v5e / v6e: 128 MiB physical VMEM -> ~4-6 MiB input blocks, raise the
    # default scoped limit (16/32 MiB) so double-buffered blocks fit.
    return 24 << 20, 64 << 20


def _pick_row_tile(rows, lane, in_bytes, out_bytes, needs_scratch, budget_bytes):
    """Largest row tile whose live VMEM footprint fits the budget."""
    # Live VMEM per tile row: 2 double-buffered input blocks + 2 output
    # buffers (+ f32 scratch for narrow output dtypes).
    per_row = lane * (2 * in_bytes + 2 * out_bytes + (4 if needs_scratch else 0))
    max_tr = max(8, budget_bytes // per_row)
    if rows <= max_tr:
        tr = rows                       # whole row extent (always a legal block)
    else:
        tr = (max_tr // 8) * 8          # largest multiple-of-8 tile that fits
    # Guarantee >=2 row blocks so both v7x TensorCores get work on the
    # "parallel" axis (costs one ~0.35us step on single-TC chips: negligible).
    if rows >= 16 and pl.cdiv(rows, tr) < 2:
        tr = 8 * pl.cdiv(pl.cdiv(rows, 2), 8)
    return tr


# ---------------------------------------------------------------------------
# Wrapper
# ---------------------------------------------------------------------------

def weighted_layer_pooling(all_hidden_states, layer_weights, layer_start=4):
    """all_hidden_states: (L_total, B, S, H); layer_weights: (L_total - layer_start,)."""
    L_total, B, S, H = all_hidden_states.shape
    L = L_total - layer_start
    assert layer_weights.shape == (L,)

    dtype = all_hidden_states.dtype

    # Normalize once on the host: the kernel is then a pure multiply-accumulate.
    w32 = layer_weights.astype(jnp.float32)
    w = w32 / w32.sum()

    # ---- flatten (B, S, H) to a lane-dense (rows, 128) slab per layer --------
    n = B * S * H
    pad = 0
    if n % 128 == 0:
        lane = 128
        rows = n // 128
        x = all_hidden_states.reshape(L_total, rows, lane)   # free contiguous view
        eff_start = layer_start
        n_layers_in_x = L_total
    else:
        # Fallback: pad the flattened length up to a multiple of 128 so stores
        # stay unmasked full-lane vst. Slice to the needed layers first so the
        # (unavoidable) pad copy only touches L layers.
        lane = 128
        pad = (-n) % 128
        rows = (n + pad) // 128
        x = all_hidden_states[layer_start:].reshape(L, n)
        x = jnp.pad(x, ((0, 0), (0, pad))).reshape(L, rows, lane)
        eff_start = 0
        n_layers_in_x = L

    direct_f32 = dtype == jnp.float32
    budget, vmem_limit = _vmem_budgets()
    itemsize = jnp.dtype(dtype).itemsize
    tr = _pick_row_tile(rows, lane, itemsize, itemsize,
                        needs_scratch=not direct_f32, budget_bytes=budget)

    kernel = _wlp_kernel_f32 if direct_f32 else _wlp_kernel_acc
    scratch_shapes = [] if direct_f32 else [pltpu.VMEM((tr, lane), jnp.float32)]

    # TODO(synk): when rows is too small to grow tr (very short sequences),
    # fold several layers per grid step ((Lb, tr, lane) blocks + unrolled
    # inner loop) to amortize per-step overhead further.

    out = pl.pallas_call(
        kernel,
        out_shape=jax.ShapeDtypeStruct((rows, lane), dtype),
        grid=(pl.cdiv(rows, tr), L),
        in_specs=[
            # small normalized weight vector lives in SMEM, read scalarly
            pl.BlockSpec(memory_space=pltpu.MemorySpace.SMEM),
            # one layer's (tr, lane) slab per step; layer offset folded into
            # the index_map so only the needed layers are DMA'd from HBM
            pl.BlockSpec((1, tr, lane), lambda r, l: (l + eff_start, r, 0)),
        ],
        out_specs=pl.BlockSpec((tr, lane), lambda r, l: (r, 0)),
        scratch_shapes=scratch_shapes,
        compiler_params=pltpu.CompilerParams(
            dimension_semantics=("parallel", "arbitrary"),
            vmem_limit_bytes=vmem_limit),
    )(w, x)

    if pad:
        out = out.reshape(-1)[:n]
    return out.reshape(B, S, H)


# ---------------------------------------------------------------------------
# Self-test
# ---------------------------------------------------------------------------

if __name__ == "__main__":
    # Module config: num_hidden_layers=8, layer_start=4
    num_hidden_layers = 8
    layer_start = 4
    B, S, H = 2, 8, 32

    key = jax.random.PRNGKey(0)
    all_hidden_states = jax.random.normal(
        key, (num_hidden_layers + 1, B, S, H), dtype=jnp.float32)

    # Deterministic parameter init, same as nn.Parameter(torch.tensor([1]*L, float))
    layer_weights = jnp.ones((num_hidden_layers + 1 - layer_start,), dtype=jnp.float32)

    out = weighted_layer_pooling(all_hidden_states, layer_weights, layer_start)
    out = jax.block_until_ready(out)

    # Pure-JAX reference check
    xs = all_hidden_states[layer_start:]
    ref = (layer_weights[:, None, None, None] * xs).sum(axis=0) / layer_weights.sum()
    assert out.shape == (B, S, H)
    assert jnp.allclose(out, ref, atol=1e-5, rtol=1e-5)

    print("KERNEL_OK")
</pallas_src>

<mosaic_0001>
module attributes {stable_mosaic.version = 11 : i64} {
  func.func @_wlp_kernel_f32(%arg0: i32, %arg1: i32, %arg2: memref<5xf32, #tpu.memory_space<smem>>, %arg3: memref<1x4x128xf32, #tpu.memory_space<vmem>>, %arg4: memref<4x128xf32, #tpu.memory_space<vmem>>) attributes {dimension_semantics = [#tpu.dimension_semantics<parallel>, #tpu.dimension_semantics<arbitrary>], iteration_bounds = array<i64: 1, 5>, scalar_prefetch = 0 : i64, scratch_operands = 0 : i64, tpu.core_type = #tpu.core_type<tc>, window_params = [{transform_indices = @transform_0, window_bounds = array<i64: 5>}, {transform_indices = @transform_1, window_bounds = array<i64: 1, 4, 128>}, {transform_indices = @transform_2, window_bounds = array<i64: 4, 128>}]} {
    %c0_i32 = arith.constant 0 : i32
    %0 = arith.cmpi eq, %arg1, %c0_i32 : i32
    %1 = arith.extui %0 : i1 to i32
    %c0_i32_0 = arith.constant 0 : i32
    %2 = arith.cmpi ne, %1, %c0_i32_0 : i32
    scf.if %2 {
      %6 = arith.index_cast %arg1 : i32 to index
      %7 = memref.load %arg2[%6] : memref<5xf32, #tpu.memory_space<smem>>
      %c0 = arith.constant 0 : index
      %c0_3 = arith.constant 0 : index
      %c0_4 = arith.constant 0 : index
      %8 = vector.load %arg3[%c0, %c0_3, %c0_4] : memref<1x4x128xf32, #tpu.memory_space<vmem>>, vector<1x4x128xf32>
      %9 = vector.shape_cast %8 : vector<1x4x128xf32> to vector<4x128xf32>
      %10 = vector.broadcast %7 : f32 to vector<4x128xf32>
      %11 = arith.mulf %10, %9 : vector<4x128xf32>
      %c0_5 = arith.constant 0 : index
      %c0_6 = arith.constant 0 : index
      %12 = vector.load %arg4[%c0_5, %c0_6] : memref<4x128xf32, #tpu.memory_space<vmem>>, vector<4x128xf32>
      tpu.vector_store %arg4[%c0_5, %c0_6], %11 {strides = array<i32>} : memref<4x128xf32, #tpu.memory_space<vmem>>, vector<4x128xf32>,
    } else {
    }
    %c0_i32_1 = arith.constant 0 : i32
    %3 = arith.cmpi ne, %arg1, %c0_i32_1 : i32
    %4 = arith.extui %3 : i1 to i32
    %c0_i32_2 = arith.constant 0 : i32
    %5 = arith.cmpi ne, %4, %c0_i32_2 : i32
    scf.if %5 {
      %c0 = arith.constant 0 : index
      %c0_3 = arith.constant 0 : index
      %6 = vector.load %arg4[%c0, %c0_3] : memref<4x128xf32, #tpu.memory_space<vmem>>, vector<4x128xf32>
      %7 = arith.index_cast %arg1 : i32 to index
      %8 = memref.load %arg2[%7] : memref<5xf32, #tpu.memory_space<smem>>
      %c0_4 = arith.constant 0 : index
      %c0_5 = arith.constant 0 : index
      %c0_6 = arith.constant 0 : index
      %9 = vector.load %arg3[%c0_4, %c0_5, %c0_6] : memref<1x4x128xf32, #tpu.memory_space<vmem>>, vector<1x4x128xf32>
      %10 = vector.shape_cast %9 : vector<1x4x128xf32> to vector<4x128xf32>
      %11 = vector.broadcast %8 : f32 to vector<4x128xf32>
      %12 = arith.mulf %11, %10 : vector<4x128xf32>
      %13 = arith.addf %6, %12 : vector<4x128xf32>
      %c0_7 = arith.constant 0 : index
      %c0_8 = arith.constant 0 : index
      %14 = vector.load %arg4[%c0_7, %c0_8] : memref<4x128xf32, #tpu.memory_space<vmem>>, vector<4x128xf32>
      tpu.vector_store %arg4[%c0_7, %c0_8], %13 {strides = array<i32>} : memref<4x128xf32, #tpu.memory_space<vmem>>, vector<4x128xf32>,
    } else {
    }
    return
  }
  func.func @transform_0(%arg0: i32, %arg1: i32) -> i32 {
    %c0_i32 = arith.constant 0 : i32
    %c0_i32_0 = arith.constant 0 : i32
    return %c0_i32 : i32
  }
  func.func @transform_1(%arg0: i32, %arg1: i32) -> (i32, i32, i32) {
    %c4_i32 = arith.constant 4 : i32
    %0 = arith.addi %arg1, %c4_i32 : i32
    %c0_i32 = arith.constant 0 : i32
    %c0_i32_0 = arith.constant 0 : i32
    return %0, %arg0, %c0_i32 : i32, i32, i32
  }
  func.func @transform_2(%arg0: i32, %arg1: i32) -> (i32, i32) {
    %c0_i32 = arith.constant 0 : i32
    %c0_i32_0 = arith.constant 0 : i32
    return %arg0, %c0_i32 : i32, i32
  }
}

</mosaic_0001>

<llo_original>
// kernel: tpu_custom_call.1
$region0: #{tpu_custom_call.1}
  #allocation0 [shape = 'u32[]', space=smem, size = 0x4, offset = 0x4, fixed_abs, tag = 'smem constant byte address 0x4 - core index']
  #allocation1 [shape = 'u32[144,128]{1,0:T(1,128)}', space=vmem, size = 0x12000, scoped, tag = 'internal scratch']
  %s0 = inlined_call_operand.hbm [shape: f32[5], index: 0, kind: input, shape index: {}]
  %s1 = inlined_call_operand.hbm [shape: f32[9,4,128], index: 1, kind: input, shape index: {}]
  %s2 = inlined_call_operand.hbm [shape: f32[4,128], index: 2, kind: output, shape index: {}]
  %s3 = sld [smem:[#allocation0]]
  $region57: #{tpu_custom_call.1} parent=0
    _
  %s5 = ssub.s32 1, %s3
  %s6 = scalar_select 0, %s5, %s3
  $region1: #{tpu_custom_call.1} parent=0
    #allocation2 [shape = 'u8[512]{0}', space=smem, size = 0x200, scoped, tag = 'input window, operand 0, single buffered']
    #allocation3 [shape = 's32[2]{0}', space=sflag, size = 0x8, scoped, tag = 'scoped memory for tpu_custom_call.1']
    #allocation4 [shape = 's32[2]{0}', space=sflag, size = 0x8, scoped, tag = 'scoped memory for tpu_custom_call.1']
    #allocation5 [shape = 's32[2]{0}', space=sflag, size = 0x8, scoped, tag = 'scoped memory for tpu_custom_call.1']
    #allocation6 [shape = 'u8[4096]{0}', space=vmem, size = 0x1000, scoped, tag = 'input window, operand 1']
    #allocation7 [shape = 'u8[2048]{0}', space=vmem, size = 0x800, scoped, tag = 'output window, operand 0, single buffered']
    %7 = vsyncpa [#allocation5], 0
    %8 = vsyncpa [#allocation3], 0
    %s9 = scalar_lea.sflag [#allocation3], 1
    %10 = vsyncpa %s9, 0
    %11 = vsyncpa [#allocation4], 0
    loop: start=0, step=1, limit=7
    $region2: #{tpu_custom_call.1} parent=1 // loop_pre_header
      _
    $region3: #{tpu_custom_call.1} parent=1 // loop_header
      %s13 = sphi 0, %s17
      %p14 = scmp.ge.s32.totalorder %s13, 7
      %s20 = sphi 0, %s32
      %s21 = sphi 0, %s28
      %s22 = sphi 0, %s20
      %s23 = sphi 0, %s21
      %s24 = sphi 0, %s22
      %s25 = sphi 0, %s23
      %s33 = sphi 0, %s33
      %s35 = sphi 0, %s33
      %s36 = sphi 0, %s35
      %s50 = sphi 0, %s36
      %s60 = sphi 0, %s62
      %s63 = sphi 0, %s60
      %s64 = sphi 0, %s63
      %s80 = sphi 0, %s64
      %s86 = sphi 0, %s88
      %s89 = sphi 0, %s86
      %s90 = sphi 0, %s89
      %s106 = sphi 0, %s90
    $region4: #{tpu_custom_call.1} parent=1 // loop_header_branch
      %16 = sbr.rel (%p14) target = $region8
    $region5: #{tpu_custom_call.1} parent=1 // loop_body
      %s18 = ssub.s32 %s13, 1
      %s19 = ssub.s32 %s13, 2
      %s26 = sadd.s32 1, %s21
      %p27 = scmp.ge.s32.totalorder %s26, 5
      %s28 = scalar_select %p27, 0, %s26
      %s29 = sadd.s32 1, %s20
      %s30 = scalar_select %p27, %s29, %s20
      %p31 = scmp.ge.s32.totalorder %s30, 1
      %s32 = scalar_select %p31, 0, %s30
      %s34 = sadd.s32 %s33, 1
      %p37 = scmp.eq.s32.totalorder %s13, 4
      %p38 = scmp.ne.s32.totalorder %s33, %s35
      %p39 = scmp.eq.s32.totalorder %s13, 0
      %p40 = por %p38, %p39
      %p41 = scmp.ne.s32.totalorder %s33, %s35
      %p42 = scmp.eq.s32.totalorder %s18, 4
      %p43 = por %p41, %p42
      %p44 = scmp.ne.s32.totalorder %s35, %s36
      %p45 = scmp.eq.s32.totalorder %s18, 0
      %p46 = por %p44, %p45
      %p47 = scmp.ne.s32.totalorder %s35, %s36
      %p48 = scmp.eq.s32.totalorder %s19, 4
      %p49 = por %p47, %p48
      %p51 = scmp.ne.s32.totalorder %s36, %s50
      %p52 = scmp.eq.s32.totalorder %s19, 0
      %p53 = por %p51, %p52
      %s54 = sadd.s32 %s21, 4
      %s55 = sadd.s32 %s28, 4
      %s56 = ssub.s32 %s54, %s55
      %s57 = ssub.s32 %s20, %s32
      %s58 = sor.u32 %s56, %s57
      %p59 = scmp.eq.s32.totalorder %s58, 0
      %s61 = sadd.s32 %s60, 1
      %s62 = scalar_select %p59, %s60, %s61
      %p65 = pneg %p59
      %p66 = scmp.eq.s32.totalorder %s13, 4
      %p67 = por %p65, %p66
      %p68 = scmp.ne.s32.totalorder %s60, %s63
      %p69 = scmp.eq.s32.totalorder %s13, 0
      %p70 = por %p68, %p69
      %p71 = scmp.ne.s32.totalorder %s60, %s63
      %p72 = scmp.eq.s32.totalorder %s18, 4
      %p73 = por %p71, %p72
      %p74 = scmp.ne.s32.totalorder %s63, %s64
      %p75 = scmp.eq.s32.totalorder %s18, 0
      %p76 = por %p74, %p75
      %p77 = scmp.ne.s32.totalorder %s63, %s64
      %p78 = scmp.eq.s32.totalorder %s19, 4
      %p79 = por %p77, %p78
      %p81 = scmp.ne.s32.totalorder %s64, %s80
      %p82 = scmp.eq.s32.totalorder %s19, 0
      %p83 = por %p81, %p82
      %s84 = ssub.s32 %s20, %s32
      %p85 = scmp.eq.s32.totalorder %s84, 0
      %s87 = sadd.s32 %s86, 1
      %s88 = scalar_select %p85, %s86, %s87
      %p91 = pneg %p85
      %p92 = scmp.eq.s32.totalorder %s13, 4
      %p93 = por %p91, %p92
      %p94 = scmp.ne.s32.totalorder %s86, %s89
      %p95 = scmp.eq.s32.totalorder %s13, 0
      %p96 = por %p94, %p95
      %p97 = scmp.ne.s32.totalorder %s86, %s89
      %p98 = scmp.eq.s32.totalorder %s18, 4
      %p99 = por %p97, %p98
      %p100 = scmp.ne.s32.totalorder %s89, %s90
      %p101 = scmp.eq.s32.totalorder %s18, 0
      %p102 = por %p100, %p101
      %p103 = scmp.ne.s32.totalorder %s89, %s90
      %p104 = scmp.eq.s32.totalorder %s19, 4
      %p105 = por %p103, %p104
      %p107 = scmp.ne.s32.totalorder %s90, %s106
      %p108 = scmp.eq.s32.totalorder %s19, 0
      %p109 = por %p107, %p108
      %p110 = scmp.le.s32.totalorder 1, %s13
      %p111 = scmp.lt.s32.totalorder %s13, 6
      %p112 = pnand %p110, %p111
      %p113 = pneg %p112
      // Predicated region
      $region9: #{tpu_custom_call.1} parent=5 // pred_check
        _
      $region10: #{tpu_custom_call.1} parent=5 // pred_check_branch
        %115 = sbr.rel (%p112) target = $region12
      $region11: #{tpu_custom_call.1} parent=5 // pred_region
        %s116 = ssub.s32 %s13, 1
        // Predicated region
        $region13: #{tpu_custom_call.1} parent=11 // pred_check
          %p117 = pneg %p46
        $region14: #{tpu_custom_call.1} parent=11 // pred_check_branch
          %119 = sbr.rel (%p117) target = $region16
        $region15: #{tpu_custom_call.1} parent=11 // pred_region
          %s121 = ssub.s32 16, 16
          %122 = vsyncadd [#allocation5], %s121
          %125 = dma.hbm_to_smem %s0, 16, [#allocation2], [#allocation5]
        $region16: #{tpu_custom_call.1} parent=11 // pred_fallthru
          _
      $region12: #{tpu_custom_call.1} parent=5 // pred_fallthru
        _
      %p126 = scmp.lt.s32.totalorder %s13, 5
      // Predicated region
      $region17: #{tpu_custom_call.1} parent=5 // pred_check
        %p127 = pneg %p126
      $region18: #{tpu_custom_call.1} parent=5 // pred_check_branch
        %129 = sbr.rel (%p127) target = $region20
      $region19: #{tpu_custom_call.1} parent=5 // pred_region
        // Predicated region
        $region21: #{tpu_custom_call.1} parent=19 // pred_check
          %p130 = pneg %p70
        $region22: #{tpu_custom_call.1} parent=19 // pred_check_branch
          %132 = sbr.rel (%p130) target = $region24
        $region23: #{tpu_custom_call.1} parent=19 // pred_region
          %s133 = sand.u32 %s60, 1
          %s134 = scalar_lea.sflag [#allocation3], %s133
          %s135 = sand.u32 %s60, 1
          %s136 = smul.addr %s135, 4
          %s137 = scalar_lea.vmem [#allocation6], %s136
          %s138 = sadd.s32 %s21, 4
          %s140 = ssub.s32 64, 64
          %141 = vsyncadd %s134, %s140
          %s142 = sadd.s32 %s20, %s138
          %s143 = smul.addr %s142, 64
          %s144 = scalar_lea.hbm %s1, %s143
          %s146 = sshll.u32 %s137, 4
          %s147 = int_to_ptr.vmem [resolvable:$true] %s146
          %149 = dma.hbm_to_vmem [thread:$0]  %s144, 64, %s147, %s134
        $region24: #{tpu_custom_call.1} parent=19 // pred_fallthru
          _
      $region20: #{tpu_custom_call.1} parent=5 // pred_fallthru
        _
      %p150 = scmp.le.s32.totalorder 1, %s13
      %p151 = scmp.lt.s32.totalorder %s13, 6
      %p152 = pnand %p150, %p151
      %p153 = pneg %p152
      // Predicated region
      $region25: #{tpu_custom_call.1} parent=5 // pred_check
        _
      $region26: #{tpu_custom_call.1} parent=5 // pred_check_branch
        %155 = sbr.rel (%p152) target = $region28
      $region27: #{tpu_custom_call.1} parent=5 // pred_region
        %s156 = ssub.s32 %s13, 1
        // Predicated region
        $region29: #{tpu_custom_call.1} parent=27 // pred_check
          %p157 = pneg %p46
        $region30: #{tpu_custom_call.1} parent=27 // pred_check_branch
          %159 = sbr.rel (%p157) target = $region32
        $region31: #{tpu_custom_call.1} parent=27 // pred_region
          %160 = dma.done [#allocation5], 16
        $region32: #{tpu_custom_call.1} parent=27 // pred_fallthru
          _
        %s161 = sand.u32 %s63, 1
        %s162 = scalar_lea.sflag [#allocation3], %s161
        %s163 = sand.u32 %s63, 1
        %s164 = smul.addr %s163, 4
        %s165 = scalar_lea.vmem [#allocation6], %s164
        // Predicated region
        $region33: #{tpu_custom_call.1} parent=27 // pred_check
          %p166 = pneg %p76
        $region34: #{tpu_custom_call.1} parent=27 // pred_check_branch
          %168 = sbr.rel (%p166) target = $region36
        $region35: #{tpu_custom_call.1} parent=27 // pred_region
          %169 = dma.done %s162, 64
        $region36: #{tpu_custom_call.1} parent=27 // pred_fallthru
          _
        %170 = sfence
        %p171 = pneg %p46
        %p172 = pneg %p43
        %s173 = sand.u32 %s63, 1
        %s174 = scalar_lea.sflag [#allocation3], %s173
        %s175 = sand.u32 %s63, 1
        %s176 = smul.addr %s175, 4
        %s177 = scalar_lea.vmem [#allocation6], %s176
        %p178 = pneg %p76
        %p179 = pneg %p73
        %p180 = pneg %p102
        %p181 = pneg %p99
        %s182 = sadd.s32 %s23, 4
        %p183 = scmp.eq.s32.totalorder %s23, 0
        // Predicated region
        $region37: #{tpu_custom_call.1} parent=27 // pred_check
          %p184 = pneg %p183
        $region38: #{tpu_custom_call.1} parent=27 // pred_check_branch
          %186 = sbr.rel (%p184) target = $region40
        $region39: #{tpu_custom_call.1} parent=27 // pred_region
          %s187 = sld [smem:[#allocation2 + %s23]]
          %v188 = vld [vmem:[%s165] sm:$0xf]
          %v189 = vstv %s187
          %v190 = vmul.f32 %v189, %v188
          %191 = vst [vmem:[#allocation7] sm:$0xf] %v190
        $region40: #{tpu_custom_call.1} parent=27 // pred_fallthru
          _
        %p192 = scmp.ne.s32.totalorder %s23, 0
        // Predicated region
        $region41: #{tpu_custom_call.1} parent=27 // pred_check
          %p193 = pneg %p192
        $region42: #{tpu_custom_call.1} parent=27 // pred_check_branch
          %195 = sbr.rel (%p193) target = $region44
        $region43: #{tpu_custom_call.1} parent=27 // pred_region
          %v196 = vld [vmem:[#allocation7] sm:$0xf]
          %s197 = sld [smem:[#allocation2 + %s23]]
          %v198 = vld [vmem:[%s165] sm:$0xf]
          %v199 = vstv %s197
          %v200 = vmul.f32 %v199, %v198
          %v201 = vadd.f32 %v196, %v200
          %202 = vst [vmem:[#allocation7] sm:$0xf] %v201
        $region44: #{tpu_custom_call.1} parent=27 // pred_fallthru
          _
        // Predicated region
        $region45: #{tpu_custom_call.1} parent=27 // pred_check
          %p203 = pneg %p99
        $region46: #{tpu_custom_call.1} parent=27 // pred_check_branch
          %205 = sbr.rel (%p203) target = $region48
        $region47: #{tpu_custom_call.1} parent=27 // pred_region
          %s207 = ssub.s32 64, 64
          %208 = vsyncadd [#allocation4], %s207
          %s209 = smul.addr %s22, 64
          %s210 = scalar_lea.hbm %s2, %s209
          %s212 = sshll.u32 [#allocation7], 4
          %s213 = int_to_ptr.vmem [resolvable:$true] %s212
          %215 = dma.vmem_to_hbm [thread:$0]  %s213, 64, %s210, [#allocation4]
        $region48: #{tpu_custom_call.1} parent=27 // pred_fallthru
          _
        // Predicated region
        $region49: #{tpu_custom_call.1} parent=27 // pred_check
          %p216 = pneg %p99
        $region50: #{tpu_custom_call.1} parent=27 // pred_check_branch
          %218 = sbr.rel (%p216) target = $region52
        $region51: #{tpu_custom_call.1} parent=27 // pred_region
          %219 = dma.done [#allocation4], 64
        $region52: #{tpu_custom_call.1} parent=27 // pred_fallthru
          _
      $region28: #{tpu_custom_call.1} parent=5 // pred_fallthru
        _
      %p220 = scmp.le.s32.totalorder 2, %s13
      // Predicated region
      $region53: #{tpu_custom_call.1} parent=5 // pred_check
        %p221 = pneg %p220
      $region54: #{tpu_custom_call.1} parent=5 // pred_check_branch
        %223 = sbr.rel (%p221) target = $region56
      $region55: #{tpu_custom_call.1} parent=5 // pred_region
        %s224 = ssub.s32 %s13, 2
      $region56: #{tpu_custom_call.1} parent=5 // pred_fallthru
        _
    $region6: #{tpu_custom_call.1} parent=1 // loop_footer
      %s17 = sadd.s32 1, %s13
    $region7: #{tpu_custom_call.1} parent=1 // loop_footer_branch
      %12 = sbr.rel target = $region3
    $region8: #{tpu_custom_call.1} parent=1 // loop_exit
      _
    %225 = vsyncpa [#allocation3], 1
    %s226 = scalar_lea.sflag [#allocation3], 1
    %227 = vsyncpa %s226, 1
    %228 = vsyncpa [#allocation4], 1
    %s229 = scalar_lea.sflag [#allocation4], 1
    %230 = vsyncpa %s229, 1
    %231 = vsyncpa [#allocation5], 1
    %s232 = scalar_lea.sflag [#allocation5], 1
    %233 = vsyncpa %s232, 1

</llo_original>
